<compile_context>
chip_gen: v7x
topology: tpu7x:2x2x1
jax: 0.10.0
libtpu: 0.0.40
codegen_flags: <defaults>
</compile_context>

<pallas_src>
import functools

import jax
import jax.numpy as jnp
from jax.experimental import pallas as pl
from jax.experimental.pallas import tpu as pltpu

LANE = 128


def _round_up(x, m):
    return ((x + m - 1) // m) * m


def _mlp_kernel(x_ref, w0_ref, wmid_ref, wlast_ref, bhid_ref, blast_ref, o_ref,
                *, n_chunks):
    """One (tile_b, n_in) batch tile through the whole MLP.

    Weight/bias blocks have constant index_maps -> fetched once, VMEM-resident.
    The tile is split into `n_chunks` independent row chunks (independent
    dependency chains) so layer-i MXU work of one chunk can overlap the
    layer-(i-1) tanh of the other.
    """
    cdtype = w0_ref.dtype
    n_mid = wmid_ref.shape[0]              # hidden->hidden layer count
    rows = x_ref.shape[0]
    cr = rows // n_chunks

    w0 = w0_ref[...]                       # (n_in, D)
    b0 = bhid_ref[0:1, :]                  # (1, D), f32

    # Layer 0: (tile, n_in) x (n_in, D) + tanh, per chunk.
    hs = []
    for c in range(n_chunks):
        x_c = x_ref[c * cr:(c + 1) * cr, :]
        z = jnp.dot(x_c, w0, preferred_element_type=jnp.float32) + b0
        hs.append(jnp.tanh(z).astype(cdtype))   # tanh in f32; cast operand only

    # Hidden layers: static unroll; chunks stay independent.
    for layer in range(n_mid):
        w = wmid_ref[layer]                      # (D, D)
        b = bhid_ref[layer + 1:layer + 2, :]     # (1, D), f32
        hs = [
            jnp.tanh(jnp.dot(h, w, preferred_element_type=jnp.float32) + b
                     ).astype(cdtype)
            for h in hs
        ]

    # Final layer: (tile, D) x (D, n_out), no activation, narrow store.
    w_last = wlast_ref[...]                # (D, n_out)
    b_last = blast_ref[...]                # (1, n_out), f32
    for c in range(n_chunks):
        z = jnp.dot(hs[c], w_last, preferred_element_type=jnp.float32) + b_last
        o_ref[c * cr:(c + 1) * cr, :] = z.astype(o_ref.dtype)


def lift_net_forward(data, params, *, tile_b=1024, compute_dtype=jnp.float32):
    """data: (B, n_input). params: list of (W(in,out), b(out,)) pairs.

    Returns (B, n_output) float32 matching: x@W1+b1 -> tanh -> ... -> W6+b6.
    compute_dtype=jnp.bfloat16 gives bf16 matmul operands with f32 accumulation
    and f32 tanh (recommended on v6e/v7x).
    """
    B, n_in = data.shape
    n_layers = len(params)
    assert n_layers >= 3, "kernel assumes >= 3 linear layers"
    D = LANE
    n_out = params[-1][0].shape[1]
    assert n_in <= D and n_out <= D
    for (w, _) in params:
        assert w.shape[0] <= D and w.shape[1] <= D

    # ---- batch tiling ----
    B8 = _round_up(B, 8)
    tile_b = max(8, min(_round_up(tile_b, 8), B8))
    # v7x has 2 TensorCores: ensure >=2 grid steps when the batch is big enough
    # that splitting is free; extra grid step is ~0.35us on 1-TC chips.
    if B8 >= 512 and tile_b >= B8:
        tile_b = _round_up(-(-B8 // 2), 16)
    n_chunks = 2 if (tile_b % 16 == 0 and tile_b >= 128) else 1
    B_pad = _round_up(B, tile_b)
    num_tiles = B_pad // tile_b

    # ---- operand packing (only rows of the 2-wide input are padded: ~KBs) ----
    x_p = data.astype(compute_dtype)
    if B_pad != B:
        x_p = jnp.pad(x_p, ((0, B_pad - B), (0, 0)))

    w0_arr = params[0][0]
    w0 = jnp.pad(w0_arr.astype(compute_dtype),
                 ((0, 0), (0, D - w0_arr.shape[1])))                 # (n_in, D)
    wmid = jnp.stack([
        jnp.pad(w.astype(compute_dtype),
                ((0, D - w.shape[0]), (0, D - w.shape[1])))
        for (w, _) in params[1:-1]
    ])                                                               # (L-2, D, D)
    wl_arr = params[-1][0]
    wlast = jnp.pad(wl_arr.astype(compute_dtype),
                    ((0, D - wl_arr.shape[0]), (0, 0)))              # (D, n_out)
    bhid = jnp.stack([
        jnp.pad(b.astype(jnp.float32), (0, D - b.shape[0]))
        for (_, b) in params[:-1]
    ])                                                               # (L-1, D)
    blast = params[-1][1].astype(jnp.float32).reshape(1, n_out)      # (1, n_out)

    kernel = functools.partial(_mlp_kernel, n_chunks=n_chunks)

    out_p = pl.pallas_call(
        kernel,
        out_shape=jax.ShapeDtypeStruct((B_pad, n_out), jnp.float32),
        grid=(num_tiles,),
        in_specs=[
            pl.BlockSpec((tile_b, n_in), lambda i: (i, 0)),            # x: streamed
            pl.BlockSpec((n_in, D), lambda i: (0, 0)),                 # w0: resident
            pl.BlockSpec((n_layers - 2, D, D), lambda i: (0, 0, 0)),   # hidden W
            pl.BlockSpec((D, n_out), lambda i: (0, 0)),                # w_last
            pl.BlockSpec((n_layers - 1, D), lambda i: (0, 0)),         # hidden b
            pl.BlockSpec((1, n_out), lambda i: (0, 0)),                # b_last
        ],
        out_specs=pl.BlockSpec((tile_b, n_out), lambda i: (i, 0)),
        compiler_params=pltpu.CompilerParams(
            dimension_semantics=("parallel",),
        ),
    )(x_p, w0, wmid, wlast, bhid, blast)

    return out_p[:B] if B_pad != B else out_p


def init_lift_net_params(key, n_input, n_hidden, n_output):
    """Matches the PyTorch init: weights ~ N(0, 0.1), biases = 0."""
    dims = [n_input] + [n_hidden] * 5 + [n_output]
    params = []
    for i in range(6):
        key, sub = jax.random.split(key)
        w = 0.1 * jax.random.normal(sub, (dims[i], dims[i + 1]), dtype=jnp.float32)
        b = jnp.zeros((dims[i + 1],), dtype=jnp.float32)
        params.append((w, b))
    return params


def lift_net_reference(data, params):
    """Pure-JAX reference for correctness checking."""
    h = data.astype(jnp.float32)
    for i, (w, b) in enumerate(params):
        h = h @ w + b
        if i < 5:
            h = jnp.tanh(h)
    return h


if __name__ == "__main__":
    # Koopman-spring setup: state dim 2 -> lifted output dim 2 + lift_d = 3.
    n_input, n_hidden, n_output = 2, 32, 3

    key = jax.random.PRNGKey(0)
    params = init_lift_net_params(key, n_input, n_hidden, n_output)
    # NOTE: self.k (scalar) and self.v ((2+lift_d, q)) are unused in forward().
    # TODO(synk): training data is loaded from ./data/train_y_3_100.npy in the
    # original script; inputs here are synthesized in-script instead.

    # Small-batch check (single tile, f32).
    key, kx = jax.random.split(key)
    data_small = jax.random.normal(kx, (8, n_input), dtype=jnp.float32)
    out_small = jax.block_until_ready(lift_net_forward(data_small, params))
    ref_small = lift_net_reference(data_small, params)
    assert out_small.shape == (8, n_output)
    assert jnp.allclose(out_small, ref_small, atol=1e-4, rtol=1e-4), \
        "small-batch mismatch vs reference"

    # Larger batch: 2 grid tiles (v7x two-TC path), row padding, 2-chunk interleave.
    key, kx = jax.random.split(key)
    data_big = jax.random.normal(kx, (1000, n_input), dtype=jnp.float32)
    out_big = jax.block_until_ready(lift_net_forward(data_big, params))
    ref_big = lift_net_reference(data_big, params)
    assert out_big.shape == (1000, n_output)
    assert jnp.allclose(out_big, ref_big, atol=1e-4, rtol=1e-4), \
        "large-batch mismatch vs reference"

    # bf16-operand path (recommended on v6e/v7x): f32 accumulation + f32 tanh,
    # so only operand rounding differs from the f32 reference.
    out_bf16 = jax.block_until_ready(
        lift_net_forward(data_big, params, compute_dtype=jnp.bfloat16))
    assert out_bf16.shape == (1000, n_output)
    assert jnp.allclose(out_bf16, ref_big, atol=5e-2, rtol=5e-2), \
        "bf16-path mismatch vs reference"

    print("KERNEL_OK")
</pallas_src>

<mosaic_0001>
module attributes {stable_mosaic.version = 11 : i64} {
  func.func @_mlp_kernel(%arg0: i32, %arg1: memref<8x2xf32, #tpu.memory_space<vmem>>, %arg2: memref<2x128xf32, #tpu.memory_space<vmem>>, %arg3: memref<4x128x128xf32, #tpu.memory_space<vmem>>, %arg4: memref<128x3xf32, #tpu.memory_space<vmem>>, %arg5: memref<5x128xf32, #tpu.memory_space<vmem>>, %arg6: memref<1x3xf32, #tpu.memory_space<vmem>>, %arg7: memref<8x3xf32, #tpu.memory_space<vmem>>) attributes {dimension_semantics = [#tpu.dimension_semantics<parallel>], iteration_bounds = array<i64: 1>, scalar_prefetch = 0 : i64, scratch_operands = 0 : i64, tpu.core_type = #tpu.core_type<tc>, window_params = [{transform_indices = @transform_0, window_bounds = array<i64: 8, 2>}, {pipeline_mode = #tpu.pipeline_mode<synchronous>, transform_indices = @transform_1, window_bounds = array<i64: 2, 128>}, {pipeline_mode = #tpu.pipeline_mode<synchronous>, transform_indices = @transform_2, window_bounds = array<i64: 4, 128, 128>}, {pipeline_mode = #tpu.pipeline_mode<synchronous>, transform_indices = @transform_3, window_bounds = array<i64: 128, 3>}, {pipeline_mode = #tpu.pipeline_mode<synchronous>, transform_indices = @transform_4, window_bounds = array<i64: 5, 128>}, {pipeline_mode = #tpu.pipeline_mode<synchronous>, transform_indices = @transform_5, window_bounds = array<i64: 1, 3>}, {transform_indices = @transform_6, window_bounds = array<i64: 8, 3>}]} {
    %c0 = arith.constant 0 : index
    %c0_0 = arith.constant 0 : index
    %0 = vector.load %arg2[%c0, %c0_0] : memref<2x128xf32, #tpu.memory_space<vmem>>, vector<2x128xf32>
    %c0_1 = arith.constant 0 : index
    %c0_2 = arith.constant 0 : index
    %1 = vector.load %arg5[%c0_1, %c0_2] : memref<5x128xf32, #tpu.memory_space<vmem>>, vector<1x128xf32>
    %c0_3 = arith.constant 0 : index
    %c0_4 = arith.constant 0 : index
    %2 = vector.load %arg1[%c0_3, %c0_4] : memref<8x2xf32, #tpu.memory_space<vmem>>, vector<8x2xf32>
    %cst = arith.constant dense<0.000000e+00> : vector<8x128xf32>
    %3 = tpu.matmul %2, %0, %cst {dimension_numbers = #tpu.dot_dimension_numbers<[1], [0], [0], [1], [0, 0, 1, 1], [], []>} : vector<8x2xf32>, vector<2x128xf32>, vector<8x128xf32> -> vector<8x128xf32>
    %4 = vector.broadcast %1 : vector<1x128xf32> to vector<8x128xf32>
    %5 = arith.addf %3, %4 : vector<8x128xf32>
    %6 = math.tanh %5 : vector<8x128xf32>
    %c0_5 = arith.constant 0 : index
    %c0_6 = arith.constant 0 : index
    %c0_7 = arith.constant 0 : index
    %7 = vector.load %arg3[%c0_5, %c0_6, %c0_7] : memref<4x128x128xf32, #tpu.memory_space<vmem>>, vector<1x128x128xf32>
    %8 = vector.shape_cast %7 : vector<1x128x128xf32> to vector<128x128xf32>
    %c1 = arith.constant 1 : index
    %c0_8 = arith.constant 0 : index
    %9 = vector.load %arg5[%c1, %c0_8] : memref<5x128xf32, #tpu.memory_space<vmem>>, vector<1x128xf32>
    %cst_9 = arith.constant dense<0.000000e+00> : vector<8x128xf32>
    %10 = tpu.matmul %6, %8, %cst_9 {dimension_numbers = #tpu.dot_dimension_numbers<[1], [0], [0], [1], [0, 0, 1, 1], [], []>} : vector<8x128xf32>, vector<128x128xf32>, vector<8x128xf32> -> vector<8x128xf32>
    %11 = vector.broadcast %9 : vector<1x128xf32> to vector<8x128xf32>
    %12 = arith.addf %10, %11 : vector<8x128xf32>
    %13 = math.tanh %12 : vector<8x128xf32>
    %c1_10 = arith.constant 1 : index
    %c0_11 = arith.constant 0 : index
    %c0_12 = arith.constant 0 : index
    %14 = vector.load %arg3[%c1_10, %c0_11, %c0_12] : memref<4x128x128xf32, #tpu.memory_space<vmem>>, vector<1x128x128xf32>
    %15 = vector.shape_cast %14 : vector<1x128x128xf32> to vector<128x128xf32>
    %c2 = arith.constant 2 : index
    %c0_13 = arith.constant 0 : index
    %16 = vector.load %arg5[%c2, %c0_13] : memref<5x128xf32, #tpu.memory_space<vmem>>, vector<1x128xf32>
    %cst_14 = arith.constant dense<0.000000e+00> : vector<8x128xf32>
    %17 = tpu.matmul %13, %15, %cst_14 {dimension_numbers = #tpu.dot_dimension_numbers<[1], [0], [0], [1], [0, 0, 1, 1], [], []>} : vector<8x128xf32>, vector<128x128xf32>, vector<8x128xf32> -> vector<8x128xf32>
    %18 = vector.broadcast %16 : vector<1x128xf32> to vector<8x128xf32>
    %19 = arith.addf %17, %18 : vector<8x128xf32>
    %20 = math.tanh %19 : vector<8x128xf32>
    %c2_15 = arith.constant 2 : index
    %c0_16 = arith.constant 0 : index
    %c0_17 = arith.constant 0 : index
    %21 = vector.load %arg3[%c2_15, %c0_16, %c0_17] : memref<4x128x128xf32, #tpu.memory_space<vmem>>, vector<1x128x128xf32>
    %22 = vector.shape_cast %21 : vector<1x128x128xf32> to vector<128x128xf32>
    %c3 = arith.constant 3 : index
    %c0_18 = arith.constant 0 : index
    %23 = vector.load %arg5[%c3, %c0_18] : memref<5x128xf32, #tpu.memory_space<vmem>>, vector<1x128xf32>
    %cst_19 = arith.constant dense<0.000000e+00> : vector<8x128xf32>
    %24 = tpu.matmul %20, %22, %cst_19 {dimension_numbers = #tpu.dot_dimension_numbers<[1], [0], [0], [1], [0, 0, 1, 1], [], []>} : vector<8x128xf32>, vector<128x128xf32>, vector<8x128xf32> -> vector<8x128xf32>
    %25 = vector.broadcast %23 : vector<1x128xf32> to vector<8x128xf32>
    %26 = arith.addf %24, %25 : vector<8x128xf32>
    %27 = math.tanh %26 : vector<8x128xf32>
    %c3_20 = arith.constant 3 : index
    %c0_21 = arith.constant 0 : index
    %c0_22 = arith.constant 0 : index
    %28 = vector.load %arg3[%c3_20, %c0_21, %c0_22] : memref<4x128x128xf32, #tpu.memory_space<vmem>>, vector<1x128x128xf32>
    %29 = vector.shape_cast %28 : vector<1x128x128xf32> to vector<128x128xf32>
    %c4 = arith.constant 4 : index
    %c0_23 = arith.constant 0 : index
    %30 = vector.load %arg5[%c4, %c0_23] : memref<5x128xf32, #tpu.memory_space<vmem>>, vector<1x128xf32>
    %cst_24 = arith.constant dense<0.000000e+00> : vector<8x128xf32>
    %31 = tpu.matmul %27, %29, %cst_24 {dimension_numbers = #tpu.dot_dimension_numbers<[1], [0], [0], [1], [0, 0, 1, 1], [], []>} : vector<8x128xf32>, vector<128x128xf32>, vector<8x128xf32> -> vector<8x128xf32>
    %32 = vector.broadcast %30 : vector<1x128xf32> to vector<8x128xf32>
    %33 = arith.addf %31, %32 : vector<8x128xf32>
    %34 = math.tanh %33 : vector<8x128xf32>
    %c0_25 = arith.constant 0 : index
    %c0_26 = arith.constant 0 : index
    %35 = vector.load %arg4[%c0_25, %c0_26] : memref<128x3xf32, #tpu.memory_space<vmem>>, vector<128x3xf32>
    %c0_27 = arith.constant 0 : index
    %c0_28 = arith.constant 0 : index
    %36 = vector.load %arg6[%c0_27, %c0_28] : memref<1x3xf32, #tpu.memory_space<vmem>>, vector<1x3xf32>
    %cst_29 = arith.constant dense<0.000000e+00> : vector<8x3xf32>
    %37 = tpu.matmul %34, %35, %cst_29 {dimension_numbers = #tpu.dot_dimension_numbers<[1], [0], [0], [1], [0, 0, 1, 1], [], []>} : vector<8x128xf32>, vector<128x3xf32>, vector<8x3xf32> -> vector<8x3xf32>
    %38 = vector.broadcast %36 : vector<1x3xf32> to vector<8x3xf32>
    %39 = arith.addf %37, %38 : vector<8x3xf32>
    %c0_30 = arith.constant 0 : index
    %c0_31 = arith.constant 0 : index
    %40 = vector.load %arg7[%c0_30, %c0_31] : memref<8x3xf32, #tpu.memory_space<vmem>>, vector<8x3xf32>
    tpu.vector_store %arg7[%c0_30, %c0_31], %39 {strides = array<i32>} : memref<8x3xf32, #tpu.memory_space<vmem>>, vector<8x3xf32>,
    return
  }
  func.func @transform_0(%arg0: i32) -> (i32, i32) {
    %c0_i32 = arith.constant 0 : i32
    %c0_i32_0 = arith.constant 0 : i32
    return %arg0, %c0_i32 : i32, i32
  }
  func.func @transform_1(%arg0: i32) -> (i32, i32) {
    %c0_i32 = arith.constant 0 : i32
    %c0_i32_0 = arith.constant 0 : i32
    %c0_i32_1 = arith.constant 0 : i32
    return %c0_i32, %c0_i32_0 : i32, i32
  }
  func.func @transform_2(%arg0: i32) -> (i32, i32, i32) {
    %c0_i32 = arith.constant 0 : i32
    %c0_i32_0 = arith.constant 0 : i32
    %c0_i32_1 = arith.constant 0 : i32
    %c0_i32_2 = arith.constant 0 : i32
    return %c0_i32, %c0_i32_0, %c0_i32_1 : i32, i32, i32
  }
  func.func @transform_3(%arg0: i32) -> (i32, i32) {
    %c0_i32 = arith.constant 0 : i32
    %c0_i32_0 = arith.constant 0 : i32
    %c0_i32_1 = arith.constant 0 : i32
    return %c0_i32, %c0_i32_0 : i32, i32
  }
  func.func @transform_4(%arg0: i32) -> (i32, i32) {
    %c0_i32 = arith.constant 0 : i32
    %c0_i32_0 = arith.constant 0 : i32
    %c0_i32_1 = arith.constant 0 : i32
    return %c0_i32, %c0_i32_0 : i32, i32
  }
  func.func @transform_5(%arg0: i32) -> (i32, i32) {
    %c0_i32 = arith.constant 0 : i32
    %c0_i32_0 = arith.constant 0 : i32
    %c0_i32_1 = arith.constant 0 : i32
    return %c0_i32, %c0_i32_0 : i32, i32
  }
  func.func @transform_6(%arg0: i32) -> (i32, i32) {
    %c0_i32 = arith.constant 0 : i32
    %c0_i32_0 = arith.constant 0 : i32
    return %arg0, %c0_i32 : i32, i32
  }
}

</mosaic_0001>

<llo_original>
// kernel: tpu_custom_call.1
$region0: #{tpu_custom_call.1}
  #allocation0 [shape = 'u32[]', space=smem, size = 0x4, offset = 0x4, fixed_abs, tag = 'smem constant byte address 0x4 - core index']
  #allocation1 [shape = 'u32[144,128]{1,0:T(1,128)}', space=vmem, size = 0x12000, scoped, tag = 'internal scratch']
  %s0 = inlined_call_operand.vmem [shape: f32[8,2], index: 0, kind: input, shape index: {}]
  %s1 = inlined_call_operand.vmem [shape: f32[2,128], index: 1, kind: input, shape index: {}]
  %s2 = inlined_call_operand.hbm [shape: f32[4,128,128], index: 2, kind: input, shape index: {}]
  %s3 = inlined_call_operand.vmem [shape: f32[128,3], index: 3, kind: input, shape index: {}]
  %s4 = inlined_call_operand.vmem [shape: f32[5,128], index: 4, kind: input, shape index: {}]
  %s5 = inlined_call_operand.vmem [shape: f32[1,3], index: 5, kind: input, shape index: {}]
  %s6 = inlined_call_operand.vmem [shape: f32[8,3], index: 6, kind: output, shape index: {}]
  %s7 = sld [smem:[#allocation0]]
  $region38: #{tpu_custom_call.1} parent=0
    _
  %s9 = ssub.s32 1, %s7
  %s10 = scalar_select 0, %s9, %s7
  $region1: #{tpu_custom_call.1} parent=0
    #allocation2 [shape = 'u8[262144]{0}', space=vmem, size = 0x40000, scoped, tag = 'input window, operand 2, single buffered']
    #allocation3 [shape = 's32[1]{0}', space=sflag, size = 0x4, scoped, tag = 'scoped memory for tpu_custom_call.1']
    %11 = vsyncpa [#allocation3], 0
    // Predicated region
    $region2: #{tpu_custom_call.1} parent=1 // pred_check
      _
    $region3: #{tpu_custom_call.1} parent=1 // pred_check_branch
      %13 = sbr.rel (0) target = $region5
    $region4: #{tpu_custom_call.1} parent=1 // pred_region
      _
    $region5: #{tpu_custom_call.1} parent=1 // pred_fallthru
      _
    // Predicated region
    $region6: #{tpu_custom_call.1} parent=1 // pred_check
      _
    $region7: #{tpu_custom_call.1} parent=1 // pred_check_branch
      %15 = sbr.rel (0) target = $region9
    $region8: #{tpu_custom_call.1} parent=1 // pred_region
      _
    $region9: #{tpu_custom_call.1} parent=1 // pred_fallthru
      _
    // Predicated region
    $region10: #{tpu_custom_call.1} parent=1 // pred_check
      _
    $region11: #{tpu_custom_call.1} parent=1 // pred_check_branch
      %17 = sbr.rel (0) target = $region13
    $region12: #{tpu_custom_call.1} parent=1 // pred_region
      %s19 = ssub.s32 8192, 8192
      %20 = vsyncadd [#allocation3], %s19
      %s21 = sshll.u32 [#allocation2], 4
      %s22 = int_to_ptr.vmem [resolvable:$true] %s21
      %27 = dma.hbm_to_vmem [thread:$0]  %s2, 8192, %s22, [#allocation3], 128, 128, 8
    $region13: #{tpu_custom_call.1} parent=1 // pred_fallthru
      _
    // Predicated region
    $region14: #{tpu_custom_call.1} parent=1 // pred_check
      _
    $region15: #{tpu_custom_call.1} parent=1 // pred_check_branch
      %29 = sbr.rel (0) target = $region17
    $region16: #{tpu_custom_call.1} parent=1 // pred_region
      _
    $region17: #{tpu_custom_call.1} parent=1 // pred_fallthru
      _
    // Predicated region
    $region18: #{tpu_custom_call.1} parent=1 // pred_check
      _
    $region19: #{tpu_custom_call.1} parent=1 // pred_check_branch
      %31 = sbr.rel (0) target = $region21
    $region20: #{tpu_custom_call.1} parent=1 // pred_region
      _
    $region21: #{tpu_custom_call.1} parent=1 // pred_fallthru
      _
    // Predicated region
    $region22: #{tpu_custom_call.1} parent=1 // pred_check
      _
    $region23: #{tpu_custom_call.1} parent=1 // pred_check_branch
      %33 = sbr.rel (0) target = $region25
    $region24: #{tpu_custom_call.1} parent=1 // pred_region
      _
    $region25: #{tpu_custom_call.1} parent=1 // pred_fallthru
      _
    // Predicated region
    $region26: #{tpu_custom_call.1} parent=1 // pred_check
      _
    $region27: #{tpu_custom_call.1} parent=1 // pred_check_branch
      %35 = sbr.rel (0) target = $region29
    $region28: #{tpu_custom_call.1} parent=1 // pred_region
      %36 = dma.done [#allocation3], 8192
    $region29: #{tpu_custom_call.1} parent=1 // pred_fallthru
      _
    %v37 = vld [vmem:[%s1] sm:$0x3]
    %v38 = vld [vmem:[%s4] sm:$0x1]
    %v39 = vld [vmem:[%s0] sm:$0xff]
    %v40 = vlaneseq
    %v41 = vshrl.u32 %v40, 7
    %v42 = vsub.s32 0, %v41
    %v43 = vrot.slane %v38, %v42
    %vm44 = vcmask 15360
    %v46 = vsel %vm44, %v39, 0
    %vm48 = vcmask 1041408
    %v50 = vsel %vm48, %v37, 0
    %52 = vmatprep.subr.mxu0 0.0
    %53 = vmatpush1.msra.mxu0 %v50
    %54 = vmatprep.subr.mxu0 0.0
    %55 = vmatpush1.msra.mxu0 0.0
    %56 = vmatprep.subr.mxu0 0.0
    %57 = vmatpush1.msra.mxu0 0.0
    %58 = vmatprep.subr.mxu0 0.0
    %59 = vmatpush1.msra.mxu0 0.0
    %60 = vmatprep.subr.mxu0 0.0
    %61 = vmatpush1.msra.mxu0 0.0
    %62 = vmatprep.subr.mxu0 0.0
    %63 = vmatpush1.msra.mxu0 0.0
    %64 = vmatprep.subr.mxu0 0.0
    %65 = vmatpush1.msra.mxu0 0.0
    %66 = vmatprep.subr.mxu0 0.0
    %67 = vmatpush1.msra.mxu0 0.0
    %68 = vmatprep.subr.mxu0 0.0
    %69 = vmatpush1.msra.mxu0 0.0
    %70 = vmatprep.subr.mxu0 0.0
    %71 = vmatpush1.msra.mxu0 0.0
    %72 = vmatprep.subr.mxu0 0.0
    %73 = vmatpush1.msra.mxu0 0.0
    %74 = vmatprep.subr.mxu0 0.0
    %75 = vmatpush1.msra.mxu0 0.0
    %76 = vmatprep.subr.mxu0 0.0
    %77 = vmatpush1.msra.mxu0 0.0
    %78 = vmatprep.subr.mxu0 0.0
    %79 = vmatpush1.msra.mxu0 0.0
    %80 = vmatprep.subr.mxu0 0.0
    %81 = vmatpush1.msra.mxu0 0.0
    %82 = vmatprep.subr.mxu0 0.0
    %83 = vmatpush1.msra.mxu0 0.0
    %84 = vmatprep.subr.mxu0 0.0
    %85 = vmatpush1.msra.mxu0 0.0
    %86 = vmatprep.subr.mxu0 0.0
    %87 = vmatpush1.msra.mxu0 0.0
    %88 = vmatprep.subr.mxu0 0.0
    %89 = vmatpush1.msra.mxu0 0.0
    %90 = vmatprep.subr.mxu0 0.0
    %91 = vmatpush1.msra.mxu0 0.0
    %92 = vmatprep.subr.mxu0 0.0
    %93 = vmatpush1.msra.mxu0 0.0
    %94 = vmatprep.subr.mxu0 0.0
    %95 = vmatpush1.msra.mxu0 0.0
    %96 = vmatprep.subr.mxu0 0.0
    %97 = vmatpush1.msra.mxu0 0.0
    %98 = vmatprep.subr.mxu0 0.0
    %99 = vmatpush1.msra.mxu0 0.0
    %100 = vmatprep.subr.mxu0 0.0
    %101 = vmatpush1.msra.mxu0 0.0
    %102 = vmatprep.subr.mxu0 0.0
    %103 = vmatpush1.msra.mxu0 0.0
    %104 = vmatprep.subr.mxu0 0.0
    %105 = vmatpush1.msra.mxu0 0.0
    %106 = vmatprep.subr.mxu0 0.0
    %107 = vmatpush1.msra.mxu0 0.0
    %108 = vmatprep.subr.mxu0 0.0
    %109 = vmatpush1.msra.mxu0 0.0
    %110 = vmatprep.subr.mxu0 0.0
    %111 = vmatpush1.msra.mxu0 0.0
    %112 = vmatprep.subr.mxu0 0.0
    %113 = vmatpush1.msra.mxu0 0.0
    %114 = vmatprep.subr.mxu0 0.0
    %115 = vmatpush1.msra.mxu0 0.0
    %116 = vmatprep.mubr.f32.mxu0 0.0
    %117 = vmatmul.mubr.f32.gmra.mrb[0].mxu0 %v46
    %v118 = vpop.f32.mrb[0].mxu0
    %v119 = vadd.f32 %v43, %v118
    %v120 = vpop.f32.mrb[0].mxu0
    %121 = vdwg.mxu0
    %v122 = vtanh.pop %v119
    %v123 = vld [vmem:[#allocation2] sm:$0xff]
    %v124 = vld [vmem:[#allocation2 + $0x8] sm:$0xff]
    %v125 = vld [vmem:[#allocation2 + $0x10] sm:$0xff]
    %v126 = vld [vmem:[#allocation2 + $0x18] sm:$0xff]
    %v127 = vld [vmem:[#allocation2 + $0x20] sm:$0xff]
    %v128 = vld [vmem:[#allocation2 + $0x28] sm:$0xff]
    %v129 = vld [vmem:[#allocation2 + $0x30] sm:$0xff]
    %v130 = vld [vmem:[#allocation2 + $0x38] sm:$0xff]
    %v131 = vld [vmem:[#allocation2 + $0x40] sm:$0xff]
    %v132 = vld [vmem:[#allocation2 + $0x48] sm:$0xff]
    %v133 = vld [vmem:[#allocation2 + $0x50] sm:$0xff]
    %v134 = vld [vmem:[#allocation2 + $0x58] sm:$0xff]
    %v135 = vld [vmem:[#allocation2 + $0x60] sm:$0xff]
    %v136 = vld [vmem:[#allocation2 + $0x68] sm:$0xff]
    %v137 = vld [vmem:[#allocation2 + $0x70] sm:$0xff]
    %v138 = vld [vmem:[#allocation2 + $0x78] sm:$0xff]
    %v139 = vld [vmem:[%s4 + $0x1] sm:$0x1]
    %v140 = vlaneseq
    %v141 = vshrl.u32 %v140, 7
    %v142 = vsub.s32 0, %v141
    %v143 = vrot.slane %v139, %v142
    %144 = vmatprep.subr.mxu0 0.0
    %145 = vmatpush1.msra.mxu0 %v123
    %146 = vmatprep.subr.mxu0 0.0
    %147 = vmatpush1.msra.mxu0 %v124
    %148 = vmatprep.subr.mxu0 0.0
    %149 = vmatpush1.msra.mxu0 %v125
    %150 = vmatprep.subr.mxu0 0.0
    %151 = vmatpush1.msra.mxu0 %v126
    %152 = vmatprep.subr.mxu0 0.0
    %153 = vmatpush1.msra.mxu0 %v127
    %154 = vmatprep.subr.mxu0 0.0
    %155 = vmatpush1.msra.mxu0 %v128
    %156 = vmatprep.subr.mxu0 0.0
    %157 = vmatpush1.msra.mxu0 %v129
    %158 = vmatprep.subr.mxu0 0.0
    %159 = vmatpush1.msra.mxu0 %v130
    %160 = vmatprep.subr.mxu0 0.0
    %161 = vmatpush1.msra.mxu0 %v131
    %162 = vmatprep.subr.mxu0 0.0
    %163 = vmatpush1.msra.mxu0 %v132
    %164 = vmatprep.subr.mxu0 0.0
    %165 = vmatpush1.msra.mxu0 %v133
    %166 = vmatprep.subr.mxu0 0.0
    %167 = vmatpush1.msra.mxu0 %v134
    %168 = vmatprep.subr.mxu0 0.0
    %169 = vmatpush1.msra.mxu0 %v135
    %170 = vmatprep.subr.mxu0 0.0
    %171 = vmatpush1.msra.mxu0 %v136
    %172 = vmatprep.subr.mxu0 0.0
    %173 = vmatpush1.msra.mxu0 %v137
    %174 = vmatprep.subr.mxu0 0.0
    %175 = vmatpush1.msra.mxu0 %v138
    %176 = vmatprep.subr.mxu0 0.0
    %177 = vmatpush1.msra.mxu0 0.0
    %178 = vmatprep.subr.mxu0 0.0
    %179 = vmatpush1.msra.mxu0 0.0
    %180 = vmatprep.subr.mxu0 0.0
    %181 = vmatpush1.msra.mxu0 0.0
    %182 = vmatprep.subr.mxu0 0.0
    %183 = vmatpush1.msra.mxu0 0.0
    %184 = vmatprep.subr.mxu0 0.0
    %185 = vmatpush1.msra.mxu0 0.0
    %186 = vmatprep.subr.mxu0 0.0
    %187 = vmatpush1.msra.mxu0 0.0
    %188 = vmatprep.subr.mxu0 0.0
    %189 = vmatpush1.msra.mxu0 0.0
    %190 = vmatprep.subr.mxu0 0.0
    %191 = vmatpush1.msra.mxu0 0.0
    %192 = vmatprep.subr.mxu0 0.0
    %193 = vmatpush1.msra.mxu0 0.0
    %194 = vmatprep.subr.mxu0 0.0
    %195 = vmatpush1.msra.mxu0 0.0
    %196 = vmatprep.subr.mxu0 0.0
    %197 = vmatpush1.msra.mxu0 0.0
    %198 = vmatprep.subr.mxu0 0.0
    %199 = vmatpush1.msra.mxu0 0.0
    %200 = vmatprep.subr.mxu0 0.0
    %201 = vmatpush1.msra.mxu0 0.0
    %202 = vmatprep.subr.mxu0 0.0
    %203 = vmatpush1.msra.mxu0 0.0
    %204 = vmatprep.subr.mxu0 0.0
    %205 = vmatpush1.msra.mxu0 0.0
    %206 = vmatprep.subr.mxu0 0.0
    %207 = vmatpush1.msra.mxu0 0.0
    %208 = vmatprep.mubr.f32.mxu0 0.0
    %209 = vmatmul.mubr.f32.gmra.mrb[0].mxu0 %v122
    %v210 = vpop.f32.mrb[0].mxu0
    %v211 = vadd.f32 %v143, %v210
    %v212 = vpop.f32.mrb[0].mxu0
    %213 = vdwg.mxu0
    %v214 = vtanh.pop %v211
    %s215 = scalar_lea.vmem [#allocation2], 128
    %v216 = vld [vmem:[%s215] sm:$0xff]
    %v217 = vld [vmem:[%s215 + $0x8] sm:$0xff]
    %v218 = vld [vmem:[%s215 + $0x10] sm:$0xff]
    %v219 = vld [vmem:[%s215 + $0x18] sm:$0xff]
    %v220 = vld [vmem:[%s215 + $0x20] sm:$0xff]
    %v221 = vld [vmem:[%s215 + $0x28] sm:$0xff]
    %v222 = vld [vmem:[%s215 + $0x30] sm:$0xff]
    %v223 = vld [vmem:[%s215 + $0x38] sm:$0xff]
    %v224 = vld [vmem:[%s215 + $0x40] sm:$0xff]
    %v225 = vld [vmem:[%s215 + $0x48] sm:$0xff]
    %v226 = vld [vmem:[%s215 + $0x50] sm:$0xff]
    %v227 = vld [vmem:[%s215 + $0x58] sm:$0xff]
    %v228 = vld [vmem:[%s215 + $0x60] sm:$0xff]
    %v229 = vld [vmem:[%s215 + $0x68] sm:$0xff]
    %v230 = vld [vmem:[%s215 + $0x70] sm:$0xff]
    %v231 = vld [vmem:[%s215 + $0x78] sm:$0xff]
    %v232 = vld [vmem:[%s4 + $0x2] sm:$0x1]
    %v233 = vlaneseq
    %v234 = vshrl.u32 %v233, 7
    %v235 = vsub.s32 0, %v234
    %v236 = vrot.slane %v232, %v235
    %237 = vmatprep.subr.mxu0 0.0
    %238 = vmatpush1.msra.mxu0 %v216
    %239 = vmatprep.subr.mxu0 0.0
    %240 = vmatpush1.msra.mxu0 %v217
    %241 = vmatprep.subr.mxu0 0.0
    %242 = vmatpush1.msra.mxu0 %v218
    %243 = vmatprep.subr.mxu0 0.0
    %244 = vmatpush1.msra.mxu0 %v219
    %245 = vmatprep.subr.mxu0 0.0
    %246 = vmatpush1.msra.mxu0 %v220
    %247 = vmatprep.subr.mxu0 0.0
    %248 = vmatpush1.msra.mxu0 %v221
    %249 = vmatprep.subr.mxu0 0.0
    %250 = vmatpush1.msra.mxu0 %v222
    %251 = vmatprep.subr.mxu0 0.0
    %252 = vmatpush1.msra.mxu0 %v223
    %253 = vmatprep.subr.mxu0 0.0
    %254 = vmatpush1.msra.mxu0 %v224
    %255 = vmatprep.subr.mxu0 0.0
    %256 = vmatpush1.msra.mxu0 %v225
    %257 = vmatprep.subr.mxu0 0.0
    %258 = vmatpush1.msra.mxu0 %v226
    %259 = vmatprep.subr.mxu0 0.0
    %260 = vmatpush1.msra.mxu0 %v227
    %261 = vmatprep.subr.mxu0 0.0
    %262 = vmatpush1.msra.mxu0 %v228
    %263 = vmatprep.subr.mxu0 0.0
    %264 = vmatpush1.msra.mxu0 %v229
    %265 = vmatprep.subr.mxu0 0.0
    %266 = vmatpush1.msra.mxu0 %v230
    %267 = vmatprep.subr.mxu0 0.0
    %268 = vmatpush1.msra.mxu0 %v231
    %269 = vmatprep.subr.mxu0 0.0
    %270 = vmatpush1.msra.mxu0 0.0
    %271 = vmatprep.subr.mxu0 0.0
    %272 = vmatpush1.msra.mxu0 0.0
    %273 = vmatprep.subr.mxu0 0.0
    %274 = vmatpush1.msra.mxu0 0.0
    %275 = vmatprep.subr.mxu0 0.0
    %276 = vmatpush1.msra.mxu0 0.0
    %277 = vmatprep.subr.mxu0 0.0
    %278 = vmatpush1.msra.mxu0 0.0
    %279 = vmatprep.subr.mxu0 0.0
    %280 = vmatpush1.msra.mxu0 0.0
    %281 = vmatprep.subr.mxu0 0.0
    %282 = vmatpush1.msra.mxu0 0.0
    %283 = vmatprep.subr.mxu0 0.0
    %284 = vmatpush1.msra.mxu0 0.0
    %285 = vmatprep.subr.mxu0 0.0
    %286 = vmatpush1.msra.mxu0 0.0
    %287 = vmatprep.subr.mxu0 0.0
    %288 = vmatpush1.msra.mxu0 0.0
    %289 = vmatprep.subr.mxu0 0.0
    %290 = vmatpush1.msra.mxu0 0.0
    %291 = vmatprep.subr.mxu0 0.0
    %292 = vmatpush1.msra.mxu0 0.0
    %293 = vmatprep.subr.mxu0 0.0
    %294 = vmatpush1.msra.mxu0 0.0
    %295 = vmatprep.subr.mxu0 0.0
    %296 = vmatpush1.msra.mxu0 0.0
    %297 = vmatprep.subr.mxu0 0.0
    %298 = vmatpush1.msra.mxu0 0.0
    %299 = vmatprep.subr.mxu0 0.0
    %300 = vmatpush1.msra.mxu0 0.0
    %301 = vmatprep.mubr.f32.mxu0 0.0
    %302 = vmatmul.mubr.f32.gmra.mrb[0].mxu0 %v214
    %v303 = vpop.f32.mrb[0].mxu0
    %v304 = vadd.f32 %v236, %v303
    %v305 = vpop.f32.mrb[0].mxu0
    %306 = vdwg.mxu0
    %v307 = vtanh.pop %v304
    %s308 = scalar_lea.vmem [#allocation2], 256
    %v309 = vld [vmem:[%s308] sm:$0xff]
    %v310 = vld [vmem:[%s308 + $0x8] sm:$0xff]
    %v311 = vld [vmem:[%s308 + $0x10] sm:$0xff]
    %v312 = vld [vmem:[%s308 + $0x18] sm:$0xff]
    %v313 = vld [vmem:[%s308 + $0x20] sm:$0xff]
    %v314 = vld [vmem:[%s308 + $0x28] sm:$0xff]
    %v315 = vld [vmem:[%s308 + $0x30] sm:$0xff]
    %v316 = vld [vmem:[%s308 + $0x38] sm:$0xff]
    %v317 = vld [vmem:[%s308 + $0x40] sm:$0xff]
    %v318 = vld [vmem:[%s308 + $0x48] sm:$0xff]
    %v319 = vld [vmem:[%s308 + $0x50] sm:$0xff]
    %v320 = vld [vmem:[%s308 + $0x58] sm:$0xff]
    %v321 = vld [vmem:[%s308 + $0x60] sm:$0xff]
    %v322 = vld [vmem:[%s308 + $0x68] sm:$0xff]
    %v323 = vld [vmem:[%s308 + $0x70] sm:$0xff]
    %v324 = vld [vmem:[%s308 + $0x78] sm:$0xff]
    %v325 = vld [vmem:[%s4 + $0x3] sm:$0x1]
    %v326 = vlaneseq
    %v327 = vshrl.u32 %v326, 7
    %v328 = vsub.s32 0, %v327
    %v329 = vrot.slane %v325, %v328
    %330 = vmatprep.subr.mxu0 0.0
    %331 = vmatpush1.msra.mxu0 %v309
    %332 = vmatprep.subr.mxu0 0.0
    %333 = vmatpush1.msra.mxu0 %v310
    %334 = vmatprep.subr.mxu0 0.0
    %335 = vmatpush1.msra.mxu0 %v311
    %336 = vmatprep.subr.mxu0 0.0
    %337 = vmatpush1.msra.mxu0 %v312
    %338 = vmatprep.subr.mxu0 0.0
    %339 = vmatpush1.msra.mxu0 %v313
    %340 = vmatprep.subr.mxu0 0.0
    %341 = vmatpush1.msra.mxu0 %v314
    %342 = vmatprep.subr.mxu0 0.0
    %343 = vmatpush1.msra.mxu0 %v315
    %344 = vmatprep.subr.mxu0 0.0
    %345 = vmatpush1.msra.mxu0 %v316
    %346 = vmatprep.subr.mxu0 0.0
    %347 = vmatpush1.msra.mxu0 %v317
    %348 = vmatprep.subr.mxu0 0.0
    %349 = vmatpush1.msra.mxu0 %v318
    %350 = vmatprep.subr.mxu0 0.0
    %351 = vmatpush1.msra.mxu0 %v319
    %352 = vmatprep.subr.mxu0 0.0
    %353 = vmatpush1.msra.mxu0 %v320
    %354 = vmatprep.subr.mxu0 0.0
    %355 = vmatpush1.msra.mxu0 %v321
    %356 = vmatprep.subr.mxu0 0.0
    %357 = vmatpush1.msra.mxu0 %v322
    %358 = vmatprep.subr.mxu0 0.0
    %359 = vmatpush1.msra.mxu0 %v323
    %360 = vmatprep.subr.mxu0 0.0
    %361 = vmatpush1.msra.mxu0 %v324
    %362 = vmatprep.subr.mxu0 0.0
    %363 = vmatpush1.msra.mxu0 0.0
    %364 = vmatprep.subr.mxu0 0.0
    %365 = vmatpush1.msra.mxu0 0.0
    %366 = vmatprep.subr.mxu0 0.0
    %367 = vmatpush1.msra.mxu0 0.0
    %368 = vmatprep.subr.mxu0 0.0
    %369 = vmatpush1.msra.mxu0 0.0
    %370 = vmatprep.subr.mxu0 0.0
    %371 = vmatpush1.msra.mxu0 0.0
    %372 = vmatprep.subr.mxu0 0.0
    %373 = vmatpush1.msra.mxu0 0.0
    %374 = vmatprep.subr.mxu0 0.0
    %375 = vmatpush1.msra.mxu0 0.0
    %376 = vmatprep.subr.mxu0 0.0
    %377 = vmatpush1.msra.mxu0 0.0
    %378 = vmatprep.subr.mxu0 0.0
    %379 = vmatpush1.msra.mxu0 0.0
    %380 = vmatprep.subr.mxu0 0.0
    %381 = vmatpush1.msra.mxu0 0.0
    %382 = vmatprep.subr.mxu0 0.0
    %383 = vmatpush1.msra.mxu0 0.0
    %384 = vmatprep.subr.mxu0 0.0
    %385 = vmatpush1.msra.mxu0 0.0
    %386 = vmatprep.subr.mxu0 0.0
    %387 = vmatpush1.msra.mxu0 0.0
    %388 = vmatprep.subr.mxu0 0.0
    %389 = vmatpush1.msra.mxu0 0.0
    %390 = vmatprep.subr.mxu0 0.0
    %391 = vmatpush1.msra.mxu0 0.0
    %392 = vmatprep.subr.mxu0 0.0
    %393 = vmatpush1.msra.mxu0 0.0
    %394 = vmatprep.mubr.f32.mxu0 0.0
    %395 = vmatmul.mubr.f32.gmra.mrb[0].mxu0 %v307
    %v396 = vpop.f32.mrb[0].mxu0
    %v397 = vadd.f32 %v329, %v396
    %v398 = vpop.f32.mrb[0].mxu0
    %399 = vdwg.mxu0
    %v400 = vtanh.pop %v397
    %s401 = scalar_lea.vmem [#allocation2], 384
    %v402 = vld [vmem:[%s401] sm:$0xff]
    %v403 = vld [vmem:[%s401 + $0x8] sm:$0xff]
    %v404 = vld [vmem:[%s401 + $0x10] sm:$0xff]
    %v405 = vld [vmem:[%s401 + $0x18] sm:$0xff]
    %v406 = vld [vmem:[%s401 + $0x20] sm:$0xff]
    %v407 = vld [vmem:[%s401 + $0x28] sm:$0xff]
    %v408 = vld [vmem:[%s401 + $0x30] sm:$0xff]
    %v409 = vld [vmem:[%s401 + $0x38] sm:$0xff]
    %v410 = vld [vmem:[%s401 + $0x40] sm:$0xff]
    %v411 = vld [vmem:[%s401 + $0x48] sm:$0xff]
    %v412 = vld [vmem:[%s401 + $0x50] sm:$0xff]
    %v413 = vld [vmem:[%s401 + $0x58] sm:$0xff]
    %v414 = vld [vmem:[%s401 + $0x60] sm:$0xff]
    %v415 = vld [vmem:[%s401 + $0x68] sm:$0xff]
    %v416 = vld [vmem:[%s401 + $0x70] sm:$0xff]
    %v417 = vld [vmem:[%s401 + $0x78] sm:$0xff]
    %v418 = vld [vmem:[%s4 + $0x4] sm:$0x1]
    %v419 = vlaneseq
    %v420 = vshrl.u32 %v419, 7
    %v421 = vsub.s32 0, %v420
    %v422 = vrot.slane %v418, %v421
    %423 = vmatprep.subr.mxu0 0.0
    %424 = vmatpush1.msra.mxu0 %v402
    %425 = vmatprep.subr.mxu0 0.0
    %426 = vmatpush1.msra.mxu0 %v403
    %427 = vmatprep.subr.mxu0 0.0
    %428 = vmatpush1.msra.mxu0 %v404
    %429 = vmatprep.subr.mxu0 0.0
    %430 = vmatpush1.msra.mxu0 %v405
    %431 = vmatprep.subr.mxu0 0.0
    %432 = vmatpush1.msra.mxu0 %v406
    %433 = vmatprep.subr.mxu0 0.0
    %434 = vmatpush1.msra.mxu0 %v407
    %435 = vmatprep.subr.mxu0 0.0
    %436 = vmatpush1.msra.mxu0 %v408
    %437 = vmatprep.subr.mxu0 0.0
    %438 = vmatpush1.msra.mxu0 %v409
    %439 = vmatprep.subr.mxu0 0.0
    %440 = vmatpush1.msra.mxu0 %v410
    %441 = vmatprep.subr.mxu0 0.0
    %442 = vmatpush1.msra.mxu0 %v411
    %443 = vmatprep.subr.mxu0 0.0
    %444 = vmatpush1.msra.mxu0 %v412
    %445 = vmatprep.subr.mxu0 0.0
    %446 = vmatpush1.msra.mxu0 %v413
    %447 = vmatprep.subr.mxu0 0.0
    %448 = vmatpush1.msra.mxu0 %v414
    %449 = vmatprep.subr.mxu0 0.0
    %450 = vmatpush1.msra.mxu0 %v415
    %451 = vmatprep.subr.mxu0 0.0
    %452 = vmatpush1.msra.mxu0 %v416
    %453 = vmatprep.subr.mxu0 0.0
    %454 = vmatpush1.msra.mxu0 %v417
    %455 = vmatprep.subr.mxu0 0.0
    %456 = vmatpush1.msra.mxu0 0.0
    %457 = vmatprep.subr.mxu0 0.0
    %458 = vmatpush1.msra.mxu0 0.0
    %459 = vmatprep.subr.mxu0 0.0
    %460 = vmatpush1.msra.mxu0 0.0
    %461 = vmatprep.subr.mxu0 0.0
    %462 = vmatpush1.msra.mxu0 0.0
    %463 = vmatprep.subr.mxu0 0.0
    %464 = vmatpush1.msra.mxu0 0.0
    %465 = vmatprep.subr.mxu0 0.0
    %466 = vmatpush1.msra.mxu0 0.0
    %467 = vmatprep.subr.mxu0 0.0
    %468 = vmatpush1.msra.mxu0 0.0
    %469 = vmatprep.subr.mxu0 0.0
    %470 = vmatpush1.msra.mxu0 0.0
    %471 = vmatprep.subr.mxu0 0.0
    %472 = vmatpush1.msra.mxu0 0.0
    %473 = vmatprep.subr.mxu0 0.0
    %474 = vmatpush1.msra.mxu0 0.0
    %475 = vmatprep.subr.mxu0 0.0
    %476 = vmatpush1.msra.mxu0 0.0
    %477 = vmatprep.subr.mxu0 0.0
    %478 = vmatpush1.msra.mxu0 0.0
    %479 = vmatprep.subr.mxu0 0.0
    %480 = vmatpush1.msra.mxu0 0.0
    %481 = vmatprep.subr.mxu0 0.0
    %482 = vmatpush1.msra.mxu0 0.0
    %483 = vmatprep.subr.mxu0 0.0
    %484 = vmatpush1.msra.mxu0 0.0
    %485 = vmatprep.subr.mxu0 0.0
    %486 = vmatpush1.msra.mxu0 0.0
    %487 = vmatprep.mubr.f32.mxu0 0.0
    %488 = vmatmul.mubr.f32.gmra.mrb[0].mxu0 %v400
    %v489 = vpop.f32.mrb[0].mxu0
    %v490 = vadd.f32 %v422, %v489
    %v491 = vpop.f32.mrb[0].mxu0
    %492 = vdwg.mxu0
    %v493 = vtanh.pop %v490
    %v494 = vld [vmem:[%s3] sm:$0xff]
    %v495 = vld [vmem:[%s3 + $0x8] sm:$0xff]
    %v496 = vld [vmem:[%s3 + $0x10] sm:$0xff]
    %v497 = vld [vmem:[%s3 + $0x18] sm:$0xff]
    %v498 = vld [vmem:[%s3 + $0x20] sm:$0xff]
    %v499 = vld [vmem:[%s3 + $0x28] sm:$0xff]
    %v500 = vld [vmem:[%s3 + $0x30] sm:$0xff]
    %v501 = vld [vmem:[%s3 + $0x38] sm:$0xff]
    %v502 = vld [vmem:[%s3 + $0x40] sm:$0xff]
    %v503 = vld [vmem:[%s3 + $0x48] sm:$0xff]
    %v504 = vld [vmem:[%s3 + $0x50] sm:$0xff]
    %v505 = vld [vmem:[%s3 + $0x58] sm:$0xff]
    %v506 = vld [vmem:[%s3 + $0x60] sm:$0xff]
    %v507 = vld [vmem:[%s3 + $0x68] sm:$0xff]
    %v508 = vld [vmem:[%s3 + $0x70] sm:$0xff]
    %v509 = vld [vmem:[%s3 + $0x78] sm:$0xff]
    %v510 = vld [vmem:[%s5] sm:$0x1]
    %v512 = vlaneseq
    %v513 = vshrl.u32 %v512, 7
    %v514 = vsub.s32 0, %v513
    %v515 = vrot.slane %v510, %v514
    %517 = vmatprep.subr.mxu0 0.0
    %518 = vmatpush1.msra.mxu0 %v494
    %519 = vmatprep.subr.mxu0 0.0
    %520 = vmatpush1.msra.mxu0 %v495
    %521 = vmatprep.subr.mxu0 0.0
    %522 = vmatpush1.msra.mxu0 %v496
    %523 = vmatprep.subr.mxu0 0.0
    %524 = vmatpush1.msra.mxu0 %v497
    %525 = vmatprep.subr.mxu0 0.0
    %526 = vmatpush1.msra.mxu0 %v498
    %527 = vmatprep.subr.mxu0 0.0
    %528 = vmatpush1.msra.mxu0 %v499
    %529 = vmatprep.subr.mxu0 0.0
    %530 = vmatpush1.msra.mxu0 %v500
    %531 = vmatprep.subr.mxu0 0.0
    %532 = vmatpush1.msra.mxu0 %v501
    %533 = vmatprep.subr.mxu0 0.0
    %534 = vmatpush1.msra.mxu0 %v502
    %535 = vmatprep.subr.mxu0 0.0
    %536 = vmatpush1.msra.mxu0 %v503
    %537 = vmatprep.subr.mxu0 0.0
    %538 = vmatpush1.msra.mxu0 %v504
    %539 = vmatprep.subr.mxu0 0.0
    %540 = vmatpush1.msra.mxu0 %v505
    %541 = vmatprep.subr.mxu0 0.0
    %542 = vmatpush1.msra.mxu0 %v506
    %543 = vmatprep.subr.mxu0 0.0
    %544 = vmatpush1.msra.mxu0 %v507
    %545 = vmatprep.subr.mxu0 0.0
    %546 = vmatpush1.msra.mxu0 %v508
    %547 = vmatprep.subr.mxu0 0.0
    %548 = vmatpush1.msra.mxu0 %v509
    %549 = vmatprep.subr.mxu0 0.0
    %550 = vmatpush1.msra.mxu0 0.0
    %551 = vmatprep.subr.mxu0 0.0
    %552 = vmatpush1.msra.mxu0 0.0
    %553 = vmatprep.subr.mxu0 0.0
    %554 = vmatpush1.msra.mxu0 0.0
    %555 = vmatprep.subr.mxu0 0.0
    %556 = vmatpush1.msra.mxu0 0.0
    %557 = vmatprep.subr.mxu0 0.0
    %558 = vmatpush1.msra.mxu0 0.0
    %559 = vmatprep.subr.mxu0 0.0
    %560 = vmatpush1.msra.mxu0 0.0
    %561 = vmatprep.subr.mxu0 0.0
    %562 = vmatpush1.msra.mxu0 0.0
    %563 = vmatprep.subr.mxu0 0.0
    %564 = vmatpush1.msra.mxu0 0.0
    %565 = vmatprep.subr.mxu0 0.0
    %566 = vmatpush1.msra.mxu0 0.0
    %567 = vmatprep.subr.mxu0 0.0
    %568 = vmatpush1.msra.mxu0 0.0
    %569 = vmatprep.subr.mxu0 0.0
    %570 = vmatpush1.msra.mxu0 0.0
    %571 = vmatprep.subr.mxu0 0.0
    %572 = vmatpush1.msra.mxu0 0.0
    %573 = vmatprep.subr.mxu0 0.0
    %574 = vmatpush1.msra.mxu0 0.0
    %575 = vmatprep.subr.mxu0 0.0
    %576 = vmatpush1.msra.mxu0 0.0
    %577 = vmatprep.subr.mxu0 0.0
    %578 = vmatpush1.msra.mxu0 0.0
    %579 = vmatprep.subr.mxu0 0.0
    %580 = vmatpush1.msra.mxu0 0.0
    %581 = vmatprep.mubr.f32.mxu0 0.0
    %582 = vmatmul.mubr.f32.gmra.mrb[0].mxu0 %v493
    %v583 = vpop.f32.mrb[0].mxu0
    %v584 = vadd.f32 %v515, %v583
    %v585 = vpop.f32.mrb[0].mxu0
    %586 = vdwg.mxu0
    %vm587 = vcmask 23552
    %588 = vst.msk [vmem:[%s6] sm:$0xff] %vm587, %v584
    // Predicated region
    $region30: #{tpu_custom_call.1} parent=1 // pred_check
      _
    $region31: #{tpu_custom_call.1} parent=1 // pred_check_branch
      %590 = sbr.rel (0) target = $region33
    $region32: #{tpu_custom_call.1} parent=1 // pred_region
      _
    $region33: #{tpu_custom_call.1} parent=1 // pred_fallthru
      _
    // Predicated region
    $region34: #{tpu_custom_call.1} parent=1 // pred_check
      _
    $region35: #{tpu_custom_call.1} parent=1 // pred_check_branch
      %592 = sbr.rel (0) target = $region37
    $region36: #{tpu_custom_call.1} parent=1 // pred_region
      _
    $region37: #{tpu_custom_call.1} parent=1 // pred_fallthru
      _
    %593 = vsyncpa [#allocation3], 1

</llo_original>
